<compile_context>
chip_gen: v5e
topology: v5e:2x2
jax: 0.10.0
libtpu: 0.0.40
codegen_flags: <defaults>
</compile_context>

<pallas_src>
import functools

import jax
import jax.numpy as jnp
from jax.experimental import pallas as pl
from jax.experimental.pallas import tpu as pltpu

LANE = 128       # TPU lane width (last dim)
ROW_TILE = 16    # row granule (covers f32's 8-sublane rule + bf16 packing)
MAX_TB = 2048    # upper cap on batch tile rows


def _round_up(x, m):
    return ((x + m - 1) // m) * m


def linear_kernel(x_ref, w_ref, b_ref, o_ref):
    # x_ref: (TB, dim) f32   -> cast to bf16 in-kernel (fused, rides the VPU)
    # w_ref: (dim, N_pad) bf16 (pre-transposed once, resident across steps)
    # b_ref: (1, N_pad) f32    (resident across steps)
    # o_ref: (TB, N_pad) f32
    x_bf16 = x_ref[...].astype(jnp.bfloat16)
    acc = jnp.dot(x_bf16, w_ref[...], preferred_element_type=jnp.float32)
    o_ref[...] = (acc + b_ref[...]).astype(o_ref.dtype)


def prepare_params(weight, bias):
    """One-time parameter prep (parameter-init time, NOT per forward call):
    transpose to (dim, N_pad), pad the class axis to a lane multiple, cast to
    bf16.  weight: (num_classes, dim) f32; bias: (num_classes,) f32."""
    num_classes, dim = weight.shape
    n_pad = _round_up(max(num_classes, LANE), LANE)
    w_pad = jnp.zeros((dim, n_pad), jnp.bfloat16).at[:, :num_classes].set(
        weight.T.astype(jnp.bfloat16))
    b_pad = jnp.zeros((1, n_pad), jnp.float32).at[0, :num_classes].set(
        bias.astype(jnp.float32))
    return w_pad, b_pad


def _vmem_capacity_bytes():
    try:
        return int(pltpu.get_tpu_info().vmem_capacity_bytes)
    except Exception:
        return 64 << 20  # conservative default (v7x per-TensorCore VMEM)


@functools.partial(jax.jit, static_argnames=("num_classes",))
def linear_net_forward(x, w_pad, b_pad, num_classes):
    """x: (B, H, W) float32; w_pad: (dim, N_pad) bf16; b_pad: (1, N_pad) f32."""
    B = x.shape[0]
    dim, n_pad = w_pad.shape

    # Flatten like x.view(B, -1).  NO dtype cast and NO batch pad here: the
    # bf16 cast is fused into the kernel and the ragged tail uses a masked
    # edge block.
    x_flat = x.reshape(B, dim)

    # ---- Hardware-aware tile sizing --------------------------------------
    vmem_cap = _vmem_capacity_bytes()
    tile_budget = vmem_cap // 4                      # keep tiles <= ~25% of VMEM
    resident = 2 * dim * n_pad * 2 + 2 * n_pad * 4   # weight (bf16) + bias (f32), dbuf
    per_row = 2 * (dim * 4 + n_pad * 4)              # f32 x tile + f32 out tile, dbuf
    avail = max(tile_budget - resident, per_row * ROW_TILE)
    cap = max(ROW_TILE, min(MAX_TB, (avail // per_row) // ROW_TILE * ROW_TILE))

    if B >= 2 * ROW_TILE:
        # Split the batch into >=2 (up to 8) steps: feeds both v7x TensorCores
        # while keeping each tile >= ~1024 rows once B is large enough to
        # amortize the ~0.35us per-step overhead.
        target_steps = max(2, min(8, pl.cdiv(B, 1024)))
        tb = min(cap, _round_up(pl.cdiv(B, target_steps), ROW_TILE))
        tb = max(tb, ROW_TILE)
    else:
        # Single step: a full-array block is always layout-legal (no masking).
        tb = B

    grid = (pl.cdiv(B, tb),)

    # VMEM estimate with the actual tile, with headroom; capped at half of
    # physical VMEM (safe on v7x's 64 MiB as well as v5e/v6e's 128 MiB).
    vmem_est = 2 * tb * dim * 4 + 2 * tb * n_pad * 4 + resident
    vmem_limit = int(min(vmem_cap // 2, max(2 * vmem_est, 16 << 20)))
    vmem_limit = max(vmem_limit, vmem_est + (1 << 20))

    out = pl.pallas_call(
        linear_kernel,
        out_shape=jax.ShapeDtypeStruct((B, n_pad), jnp.float32),
        grid_spec=pltpu.PrefetchScalarGridSpec(
            num_scalar_prefetch=0,
            grid=grid,
            in_specs=[
                pl.BlockSpec((tb, dim), lambda i: (i, 0)),     # batch-tiled activations (f32)
                pl.BlockSpec((dim, n_pad), lambda i: (0, 0)),  # full weight, resident
                pl.BlockSpec((1, n_pad), lambda i: (0, 0)),    # full bias, resident
            ],
            out_specs=pl.BlockSpec((tb, n_pad), lambda i: (i, 0)),
        ),
        compiler_params=pltpu.CompilerParams(
            dimension_semantics=("parallel",),
            vmem_limit_bytes=vmem_limit),
    )(x_flat, w_pad, b_pad)

    # Slice the lane padding back off (rows are already exact).
    return out[:, :num_classes]


if __name__ == "__main__":
    # Small shapes consistent with the module: img_size = (16, 16), num_classes = 10
    B, H, W = 2, 16, 16
    num_classes = 10
    dim = H * W

    key = jax.random.PRNGKey(0)
    kx, kw, kb = jax.random.split(key, 3)

    x = jax.random.normal(kx, (B, H, W), dtype=jnp.float32)
    # Deterministic parameter init (mimics nn.Linear uniform(-1/sqrt(dim), 1/sqrt(dim)))
    bound = 1.0 / jnp.sqrt(dim)
    weight = jax.random.uniform(kw, (num_classes, dim), minval=-bound, maxval=bound,
                                dtype=jnp.float32)
    bias = jax.random.uniform(kb, (num_classes,), minval=-bound, maxval=bound,
                              dtype=jnp.float32)

    # One-time parameter prep (transpose + pad + bf16 cast); not per-call.
    w_pad, b_pad = prepare_params(weight, bias)

    out = linear_net_forward(x, w_pad, b_pad, num_classes)
    out = jax.block_until_ready(out)

    # References: same bf16-input / f32-accumulate numerics, plus a loose f32 check.
    x_flat = x.reshape(B, -1)
    ref_bf16 = jnp.dot(x_flat.astype(jnp.bfloat16), weight.T.astype(jnp.bfloat16),
                       preferred_element_type=jnp.float32) + bias
    ref_f32 = x_flat @ weight.T + bias

    assert out.shape == (B, num_classes)
    assert jnp.allclose(out, ref_bf16, atol=1e-3, rtol=1e-3)
    assert jnp.allclose(out, ref_f32, atol=5e-2, rtol=5e-2)

    print("KERNEL_OK")
</pallas_src>

<mosaic_0001>
module attributes {stable_mosaic.version = 11 : i64} {
  func.func @linear_kernel(%arg0: i32, %arg1: memref<2x256xf32, #tpu.memory_space<vmem>>, %arg2: memref<256x128xbf16, #tpu.memory_space<vmem>>, %arg3: memref<1x128xf32, #tpu.memory_space<vmem>>, %arg4: memref<2x128xf32, #tpu.memory_space<vmem>>) attributes {dimension_semantics = [#tpu.dimension_semantics<parallel>], iteration_bounds = array<i64: 1>, scalar_prefetch = 0 : i64, scratch_operands = 0 : i64, tpu.core_type = #tpu.core_type<tc>, window_params = [{transform_indices = @transform_0, window_bounds = array<i64: 2, 256>}, {pipeline_mode = #tpu.pipeline_mode<synchronous>, transform_indices = @transform_1, window_bounds = array<i64: 256, 128>}, {pipeline_mode = #tpu.pipeline_mode<synchronous>, transform_indices = @transform_2, window_bounds = array<i64: 1, 128>}, {transform_indices = @transform_3, window_bounds = array<i64: 2, 128>}]} {
    %c0 = arith.constant 0 : index
    %c0_0 = arith.constant 0 : index
    %0 = vector.load %arg1[%c0, %c0_0] : memref<2x256xf32, #tpu.memory_space<vmem>>, vector<2x256xf32>
    %1 = arith.truncf %0 : vector<2x256xf32> to vector<2x256xbf16>
    %c0_1 = arith.constant 0 : index
    %c0_2 = arith.constant 0 : index
    %2 = vector.load %arg2[%c0_1, %c0_2] : memref<256x128xbf16, #tpu.memory_space<vmem>>, vector<256x128xbf16>
    %cst = arith.constant dense<0.000000e+00> : vector<2x128xf32>
    %3 = tpu.matmul %1, %2, %cst {dimension_numbers = #tpu.dot_dimension_numbers<[1], [0], [0], [1], [0, 0, 1, 1], [], []>} : vector<2x256xbf16>, vector<256x128xbf16>, vector<2x128xf32> -> vector<2x128xf32>
    %c0_3 = arith.constant 0 : index
    %c0_4 = arith.constant 0 : index
    %4 = vector.load %arg3[%c0_3, %c0_4] : memref<1x128xf32, #tpu.memory_space<vmem>>, vector<1x128xf32>
    %5 = vector.broadcast %4 : vector<1x128xf32> to vector<2x128xf32>
    %6 = arith.addf %3, %5 : vector<2x128xf32>
    %c0_5 = arith.constant 0 : index
    %c0_6 = arith.constant 0 : index
    %7 = vector.load %arg4[%c0_5, %c0_6] : memref<2x128xf32, #tpu.memory_space<vmem>>, vector<2x128xf32>
    tpu.vector_store %arg4[%c0_5, %c0_6], %6 {strides = array<i32>} : memref<2x128xf32, #tpu.memory_space<vmem>>, vector<2x128xf32>,
    return
  }
  func.func @transform_0(%arg0: i32) -> (i32, i32) {
    %c0_i32 = arith.constant 0 : i32
    %c0_i32_0 = arith.constant 0 : i32
    return %arg0, %c0_i32 : i32, i32
  }
  func.func @transform_1(%arg0: i32) -> (i32, i32) {
    %c0_i32 = arith.constant 0 : i32
    %c0_i32_0 = arith.constant 0 : i32
    %c0_i32_1 = arith.constant 0 : i32
    return %c0_i32, %c0_i32_0 : i32, i32
  }
  func.func @transform_2(%arg0: i32) -> (i32, i32) {
    %c0_i32 = arith.constant 0 : i32
    %c0_i32_0 = arith.constant 0 : i32
    %c0_i32_1 = arith.constant 0 : i32
    return %c0_i32, %c0_i32_0 : i32, i32
  }
  func.func @transform_3(%arg0: i32) -> (i32, i32) {
    %c0_i32 = arith.constant 0 : i32
    %c0_i32_0 = arith.constant 0 : i32
    return %arg0, %c0_i32 : i32, i32
  }
}

</mosaic_0001>

<llo_original>
// kernel: linear_net_forward.1
$region0: #{linear_net_forward.1}
  #allocation0 [shape = 'u32[]', space=smem, size = 0x4, offset = 0x4, fixed_abs, tag = 'smem constant byte address 0x4 - core index']
  #allocation1 [shape = 'u32[72,128]{1,0:T(1,128)}', space=vmem, size = 0x9000, scoped, tag = 'internal scratch']
  %s0 = inlined_call_operand.vmem [shape: f32[2,256], index: 0, kind: input, shape index: {}]
  %s1 = inlined_call_operand.hbm [shape: bf16[256,128], index: 1, kind: input, shape index: {}]
  %s2 = inlined_call_operand.vmem [shape: f32[1,128], index: 2, kind: input, shape index: {}]
  %s3 = inlined_call_operand.hbm [shape: f32[2,128], index: 3, kind: output, shape index: {}]
  %s4 = sld [smem:[#allocation0]]
  $region26: #{linear_net_forward.1} parent=0
    _
  %s6 = ssub.s32 1, %s4
  %s7 = scalar_select 0, %s6, %s4
  $region1: #{linear_net_forward.1} parent=0
    #allocation2 [shape = 'u8[65536]{0}', space=vmem, size = 0x10000, scoped, tag = 'input window, operand 1, single buffered']
    #allocation3 [shape = 's32[1]{0}', space=sflag, size = 0x4, scoped, tag = 'scoped memory for linear_net_forward.1']
    #allocation4 [shape = 's32[1]{0}', space=sflag, size = 0x4, scoped, tag = 'scoped memory for linear_net_forward.1']
    #allocation5 [shape = 'u8[1024]{0}', space=vmem, size = 0x400, scoped, tag = 'output window, operand 0, single buffered']
    %8 = vsyncpa [#allocation3], 0
    %9 = vsyncpa [#allocation4], 0
    // Predicated region
    $region2: #{linear_net_forward.1} parent=1 // pred_check
      _
    $region3: #{linear_net_forward.1} parent=1 // pred_check_branch
      %11 = sbr.rel (0) target = $region5
    $region4: #{linear_net_forward.1} parent=1 // pred_region
      _
    $region5: #{linear_net_forward.1} parent=1 // pred_fallthru
      _
    // Predicated region
    $region6: #{linear_net_forward.1} parent=1 // pred_check
      _
    $region7: #{linear_net_forward.1} parent=1 // pred_check_branch
      %13 = sbr.rel (0) target = $region9
    $region8: #{linear_net_forward.1} parent=1 // pred_region
      %15 = vsyncadd [#allocation3], 0
      %s16 = sshll.u32 %s1, 4
      %s17 = int_to_ptr.hbm [resolvable:$true] %s16
      %s18 = sshll.u32 [#allocation2], 4
      %s19 = int_to_ptr.vmem [resolvable:$true] %s18
      %24 = dma.hbm_to_vmem [thread:$0]  %s17, 2048, %s19, [#allocation3], 64, 64, 4
    $region9: #{linear_net_forward.1} parent=1 // pred_fallthru
      _
    // Predicated region
    $region10: #{linear_net_forward.1} parent=1 // pred_check
      _
    $region11: #{linear_net_forward.1} parent=1 // pred_check_branch
      %26 = sbr.rel (0) target = $region13
    $region12: #{linear_net_forward.1} parent=1 // pred_region
      _
    $region13: #{linear_net_forward.1} parent=1 // pred_fallthru
      _
    // Predicated region
    $region14: #{linear_net_forward.1} parent=1 // pred_check
      _
    $region15: #{linear_net_forward.1} parent=1 // pred_check_branch
      %28 = sbr.rel (0) target = $region17
    $region16: #{linear_net_forward.1} parent=1 // pred_region
      %30 = dma.done [#allocation3], 2048
    $region17: #{linear_net_forward.1} parent=1 // pred_fallthru
      _
    %v31 = vld [vmem:[%s0] sm:$0xf]
    %33 = vst [vmem:[#allocation1] ss:$4 sm:$0xff] %v31
    %v34 = vld.sshfl [vmem:[#allocation1] sm:$0xff pattern:$0x73625140]
    %v35 = vld.sshfl [vmem:[#allocation1 + $0x8] sm:$0xff pattern:$0x73625140]
    %v38 = vpack.c.bf16 %v34, %v34
    %v39 = vpack.c.bf16 %v35, %v35
    %v40 = vld [vmem:[#allocation2] sm:$0xf]
    %v41 = vld [vmem:[#allocation2 + $0x4] sm:$0xf]
    %v42 = vld [vmem:[#allocation2 + $0x8] sm:$0xf]
    %v43 = vld [vmem:[#allocation2 + $0xc] sm:$0xf]
    %v44 = vld [vmem:[#allocation2 + $0x10] sm:$0xf]
    %v45 = vld [vmem:[#allocation2 + $0x14] sm:$0xf]
    %v46 = vld [vmem:[#allocation2 + $0x18] sm:$0xf]
    %v47 = vld [vmem:[#allocation2 + $0x1c] sm:$0xf]
    %v48 = vld [vmem:[#allocation2 + $0x20] sm:$0xf]
    %v49 = vld [vmem:[#allocation2 + $0x24] sm:$0xf]
    %v50 = vld [vmem:[#allocation2 + $0x28] sm:$0xf]
    %v51 = vld [vmem:[#allocation2 + $0x2c] sm:$0xf]
    %v52 = vld [vmem:[#allocation2 + $0x30] sm:$0xf]
    %v53 = vld [vmem:[#allocation2 + $0x34] sm:$0xf]
    %v54 = vld [vmem:[#allocation2 + $0x38] sm:$0xf]
    %v55 = vld [vmem:[#allocation2 + $0x3c] sm:$0xf]
    %v56 = vld [vmem:[#allocation2 + $0x40] sm:$0xf]
    %v57 = vld [vmem:[#allocation2 + $0x44] sm:$0xf]
    %v58 = vld [vmem:[#allocation2 + $0x48] sm:$0xf]
    %v59 = vld [vmem:[#allocation2 + $0x4c] sm:$0xf]
    %v60 = vld [vmem:[#allocation2 + $0x50] sm:$0xf]
    %v61 = vld [vmem:[#allocation2 + $0x54] sm:$0xf]
    %v62 = vld [vmem:[#allocation2 + $0x58] sm:$0xf]
    %v63 = vld [vmem:[#allocation2 + $0x5c] sm:$0xf]
    %v64 = vld [vmem:[#allocation2 + $0x60] sm:$0xf]
    %v65 = vld [vmem:[#allocation2 + $0x64] sm:$0xf]
    %v66 = vld [vmem:[#allocation2 + $0x68] sm:$0xf]
    %v67 = vld [vmem:[#allocation2 + $0x6c] sm:$0xf]
    %v68 = vld [vmem:[#allocation2 + $0x70] sm:$0xf]
    %v69 = vld [vmem:[#allocation2 + $0x74] sm:$0xf]
    %v70 = vld [vmem:[#allocation2 + $0x78] sm:$0xf]
    %v71 = vld [vmem:[#allocation2 + $0x7c] sm:$0xf]
    %v72 = vld [vmem:[%s2] sm:$0x1]
    %v74 = vperm.slane %v72, 0
    %v108 = vunpack.c.l.b16 %v40
    %v109 = vunpack.c.l.b16 %v41
    %v110 = vunpack.c.l.b16 %v42
    %v111 = vunpack.c.l.b16 %v43
    %v112 = vunpack.c.l.b16 %v44
    %v113 = vunpack.c.l.b16 %v45
    %v114 = vunpack.c.l.b16 %v46
    %v115 = vunpack.c.l.b16 %v47
    %v116 = vunpack.c.l.b16 %v48
    %v117 = vunpack.c.l.b16 %v49
    %v118 = vunpack.c.l.b16 %v50
    %v119 = vunpack.c.l.b16 %v51
    %v120 = vunpack.c.l.b16 %v52
    %v121 = vunpack.c.l.b16 %v53
    %v122 = vunpack.c.l.b16 %v54
    %v123 = vunpack.c.l.b16 %v55
    %v124 = vunpack.c.l.b16 %v56
    %v125 = vunpack.c.l.b16 %v57
    %v126 = vunpack.c.l.b16 %v58
    %v127 = vunpack.c.l.b16 %v59
    %v128 = vunpack.c.l.b16 %v60
    %v129 = vunpack.c.l.b16 %v61
    %v130 = vunpack.c.l.b16 %v62
    %v131 = vunpack.c.l.b16 %v63
    %v132 = vunpack.c.l.b16 %v64
    %v133 = vunpack.c.l.b16 %v65
    %v134 = vunpack.c.l.b16 %v66
    %v135 = vunpack.c.l.b16 %v67
    %v136 = vunpack.c.l.b16 %v68
    %v137 = vunpack.c.l.b16 %v69
    %v138 = vunpack.c.l.b16 %v70
    %v139 = vunpack.c.l.b16 %v71
    %v140 = vpack.c.b16 %v109, %v108
    %v141 = vpack.c.b16 %v111, %v110
    %v142 = vpack.c.b16 %v113, %v112
    %v143 = vpack.c.b16 %v115, %v114
    %v144 = vpack.c.b16 %v117, %v116
    %v145 = vpack.c.b16 %v119, %v118
    %v146 = vpack.c.b16 %v121, %v120
    %v147 = vpack.c.b16 %v123, %v122
    %v148 = vpack.c.b16 %v125, %v124
    %v149 = vpack.c.b16 %v127, %v126
    %v150 = vpack.c.b16 %v129, %v128
    %v151 = vpack.c.b16 %v131, %v130
    %v152 = vpack.c.b16 %v133, %v132
    %v153 = vpack.c.b16 %v135, %v134
    %v154 = vpack.c.b16 %v137, %v136
    %v155 = vpack.c.b16 %v139, %v138
    %172 = vmatpush.bf16.msra.mxu0 %v147
    %173 = vmatpush.bf16.msra.mxu0 %v146
    %174 = vmatpush.bf16.msra.mxu0 %v145
    %175 = vmatpush.bf16.msra.mxu0 %v144
    %176 = vmatpush.bf16.msra.mxu0 %v143
    %177 = vmatpush.bf16.msra.mxu0 %v142
    %178 = vmatpush.bf16.msra.mxu0 %v141
    %179 = vmatpush.bf16.msra.mxu0 %v140
    %180 = vmatmul.bf16.gmra.mxu0 %v38
    %v181 = vpop.f32.mrf.mxu0
    %v182 = vadd.f32 %v74, %v181
    %v183 = vpop.f32.mrf.mxu0
    %184 = vdwg.mxu0
    %185 = vmatpush.bf16.msra.mxu0 %v155
    %186 = vmatpush.bf16.msra.mxu0 %v154
    %187 = vmatpush.bf16.msra.mxu0 %v153
    %188 = vmatpush.bf16.msra.mxu0 %v152
    %189 = vmatpush.bf16.msra.mxu0 %v151
    %190 = vmatpush.bf16.msra.mxu0 %v150
    %191 = vmatpush.bf16.msra.mxu0 %v149
    %192 = vmatpush.bf16.msra.mxu0 %v148
    %193 = vmatmul.bf16.gmra.mxu0 %v39
    %v194 = vpop.f32.mrf.mxu0
    %v195 = vadd.f32 %v182, %v194
    %v196 = vpop.f32.mrf.mxu0
    %197 = vdwg.mxu0
    %198 = vst [vmem:[#allocation5] sm:$0x3] %v195
    // Predicated region
    $region18: #{linear_net_forward.1} parent=1 // pred_check
      _
    $region19: #{linear_net_forward.1} parent=1 // pred_check_branch
      %200 = sbr.rel (0) target = $region21
    $region20: #{linear_net_forward.1} parent=1 // pred_region
      %202 = vsyncadd [#allocation4], 0
      %s204 = sshll.u32 [#allocation5], 4
      %s205 = int_to_ptr.vmem [resolvable:$true] %s204
      %s206 = sshll.u32 %s3, 4
      %s207 = int_to_ptr.hbm [resolvable:$true] %s206
      %209 = dma.vmem_to_hbm [thread:$0]  %s205, 32, %s207, [#allocation4]
    $region21: #{linear_net_forward.1} parent=1 // pred_fallthru
      _
    // Predicated region
    $region22: #{linear_net_forward.1} parent=1 // pred_check
      _
    $region23: #{linear_net_forward.1} parent=1 // pred_check_branch
      %211 = sbr.rel (0) target = $region25
    $region24: #{linear_net_forward.1} parent=1 // pred_region
      %213 = dma.done [#allocation4], 32
    $region25: #{linear_net_forward.1} parent=1 // pred_fallthru
      _
    %214 = vsyncpa [#allocation3], 1
    %215 = vsyncpa [#allocation4], 1

</llo_original>
